<compile_context>
chip_gen: v6e
topology: v6e:2x2x1
jax: 0.10.0
libtpu: 0.0.40
codegen_flags: <defaults>
</compile_context>

<pallas_src>
import jax
import jax.numpy as jnp
from jax.experimental import pallas as pl
from jax.experimental.pallas import tpu as pltpu


def _prod_last_dim(y):
    """Product over the last (lane) axis via a halving multiply tree.

    Uses only static lane slices, elementwise multiplies and (for odd widths) a
    masked select — all of which lower cleanly in Mosaic.  Instruction count is
    ~log2(D) ops per 8-row vreg group, i.e. the same as the rotate-and-multiply
    tree a native lane reduce would emit.
    """
    d = y.shape[-1]
    while d > 1:
        half = d // 2
        prod = y[:, :half] * y[:, half:2 * half]
        if d % 2:
            last = y[:, d - 1:d]                                   # (tm, 1)
            col0 = jax.lax.broadcasted_iota(jnp.int32, (1, half), 1) == 0
            prod = prod * jnp.where(col0, last, 1.0)
        y = prod
        d = half
    return y                                                        # (tm, 1)


def _horn_kernel(body_ref, fw_ref, out_ref):
    # body_ref: (TM, D) streamed tile; fw_ref: (2, D) resident [fuzzy_w; 1-fuzzy_w]
    # out_ref: (TM, 1) fuzzy truth value of the Horn clause per batch row.
    fw = fw_ref[0:1, :]                      # (1, D)
    not_fw = fw_ref[1:2, :]                  # (1, D)
    body = body_ref[...]                     # (TM, D)
    if body.dtype != fw.dtype:
        body = body.astype(fw.dtype)
    # probabilistic OR(body, 1 - fw) == (1 - fw) + body * fw
    y = not_fw + body * fw
    # fuzzy AND over the body dimension: product along lanes, accumulated in f32.
    out_ref[...] = _prod_last_dim(y.astype(jnp.float32)).astype(out_ref.dtype)


def _round_up(x, m):
    return ((x + m - 1) // m) * m


def _vmem_budgets():
    """(scoped VMEM limit, per-input-buffer budget) in bytes, per generation."""
    try:
        cap = pltpu.get_tpu_info().vmem_capacity_bytes
    except Exception:
        cap = 64 * 1024 * 1024                 # conservative (v7x per-TC VMEM)
    if cap >= 128 * 1024 * 1024:               # v5e / v6e: 128 MiB physical
        return 64 * 1024 * 1024, 24 * 1024 * 1024
    return 32 * 1024 * 1024, 12 * 1024 * 1024  # v7x: 64 MiB per TensorCore


def horn_layer_forward(body, weights, extraction_threshold=None,
                       compute_dtype=jnp.float32, max_rows_per_tile=None):
    """HornLayer forward.

    body:    (batch, body_size) fuzzy truth values (float32 or bfloat16).
    weights: (body_size,) clause-membership logits.
    compute_dtype: dtype of the elementwise OR (f32 everywhere; bf16 is a fast
        path for v6e/v7x — slightly different numerics, product stays f32).
    Returns: (batch,) float32.
    """
    batch, body_size = body.shape
    assert weights.shape == (body_size,)

    # --- weight preprocessing hoisted out of the per-tile kernel (tiny (D,) op)
    fuzzy_w = jax.nn.sigmoid(weights.astype(jnp.float32))
    # NOTE: threshold == 0.0 is falsy (skips thresholding) — mirrors the torch code.
    if extraction_threshold:
        fuzzy_w = jnp.where(fuzzy_w < extraction_threshold,
                            jnp.float32(0.0), fuzzy_w)
    # Row 0: fuzzy_w ; row 1: 1 - fuzzy_w  → kernel does y = not_fw + body*fw.
    fw_rows = jnp.stack([fuzzy_w, 1.0 - fuzzy_w], axis=0).astype(compute_dtype)

    # --- batch tiling: big sublane-aligned tiles from the VMEM budget, but keep
    # >= ~8 grid steps when the batch is large (pipeline depth + both v7x cores).
    vmem_limit, per_buffer_budget = _vmem_budgets()
    itemsize = jnp.dtype(body.dtype).itemsize
    sublane = max(8, 32 // max(1, itemsize))     # 8 rows f32, 16 bf16, 32 int8
    budget_tm = max(sublane, per_buffer_budget // max(1, body_size * itemsize))
    min_tiles = 8
    target_tm = _round_up(pl.cdiv(batch, min_tiles), sublane)
    tm = min(budget_tm, target_tm)
    if max_rows_per_tile is not None:
        tm = min(tm, max(sublane, max_rows_per_tile))
    tm = max(sublane, (tm // sublane) * sublane)
    if tm >= batch:
        tm = batch            # single block covering the full batch dim
    # TODO(synk): if body_size is ever so large that a sublane-height tile blows the
    # VMEM budget, add a second ("arbitrary") grid axis over body_size with a
    # multiplicative (tm, 1) accumulator scratch.
    # TODO(synk): if the producer can emit body as (body_size, batch), switch to a
    # lanes=batch layout (sublane-tree product reduce + lane-dense output); do NOT
    # transpose here — that would cost a full extra HBM pass.

    grid = (pl.cdiv(batch, tm),)   # ragged last block is masked by Pallas; no
                                   # wrapper-side jnp.pad (no extra HBM copy).

    out = pl.pallas_call(
        _horn_kernel,
        out_shape=jax.ShapeDtypeStruct((batch, 1), jnp.float32),
        grid_spec=pltpu.PrefetchScalarGridSpec(
            num_scalar_prefetch=0,
            grid=grid,
            in_specs=[
                pl.BlockSpec((tm, body_size), lambda i: (i, 0)),   # streamed body tile
                pl.BlockSpec((2, body_size), lambda i: (0, 0)),    # resident weight rows
            ],
            out_specs=pl.BlockSpec((tm, 1), lambda i: (i, 0)),
        ),
        compiler_params=pltpu.CompilerParams(
            dimension_semantics=("parallel",),     # shard batch tiles across TCs
            vmem_limit_bytes=vmem_limit,
        ),
    )(body, fw_rows)
    return out[:, 0]


def horn_layer_reference(body, weights, extraction_threshold=None):
    """Literal f32 translation of HornLayer.forward with product fuzzy ops."""
    fuzzy_w = jax.nn.sigmoid(weights.astype(jnp.float32))
    if extraction_threshold:
        fuzzy_w = jnp.where(fuzzy_w < extraction_threshold, 0.0, fuzzy_w)
    not_w = 1.0 - fuzzy_w
    b = body.astype(jnp.float32)
    y = b + not_w - b * not_w
    return jnp.prod(y, axis=-1)


if __name__ == "__main__":
    key = jax.random.PRNGKey(0)
    k_body, k_w, k_body2, k_body3 = jax.random.split(key, 4)

    body_size = 128
    weights = jax.random.normal(k_w, (body_size,), dtype=jnp.float32)
    thr = 0.3

    def check(out, ref, rtol):
        assert out.shape == ref.shape
        assert bool(jnp.all(jnp.isfinite(out)))
        assert jnp.allclose(out, ref, rtol=rtol, atol=0.0), (out, ref)

    # 1) tiny batch (single full-extent block), threshold on
    body1 = jax.random.uniform(k_body, (2, body_size), dtype=jnp.float32)
    out1 = jax.block_until_ready(horn_layer_forward(body1, weights, thr))
    check(out1, horn_layer_reference(body1, weights, thr), rtol=3e-4)

    # 2) no-threshold path
    body2 = jax.random.uniform(k_body2, (8, body_size), dtype=jnp.float32)
    out2 = jax.block_until_ready(horn_layer_forward(body2, weights, None))
    check(out2, horn_layer_reference(body2, weights, None), rtol=3e-4)

    # 3) ragged multi-tile grid (batch not a multiple of tm) — no wrapper pad
    body3 = jax.random.uniform(k_body3, (37, body_size), dtype=jnp.float32)
    out3 = jax.block_until_ready(
        horn_layer_forward(body3, weights, thr, max_rows_per_tile=16))
    check(out3, horn_layer_reference(body3, weights, thr), rtol=3e-4)

    # 4) default tile sizing / multi-step grid
    body4 = jax.random.uniform(k_body, (256, body_size), dtype=jnp.float32)
    out4 = jax.block_until_ready(horn_layer_forward(body4, weights, thr))
    check(out4, horn_layer_reference(body4, weights, thr), rtol=3e-4)

    # 5) bf16 body, f32 compute (halves HBM bytes, same numerics)
    body5 = body3.astype(jnp.bfloat16)
    out5 = jax.block_until_ready(horn_layer_forward(body5, weights, thr))
    check(out5, horn_layer_reference(body5, weights, thr), rtol=3e-4)

    # 6) bf16 body, bf16 elementwise compute (v6e/v7x fast path); the 128-term
    #    product amplifies bf16 rounding, so compare loosely against f32 ref.
    out6 = jax.block_until_ready(
        horn_layer_forward(body5, weights, thr, compute_dtype=jnp.bfloat16))
    check(out6, horn_layer_reference(body5, weights, thr), rtol=2.5e-1)

    print("KERNEL_OK")
</pallas_src>

<mosaic_0001>
module attributes {stable_mosaic.version = 11 : i64} {
  func.func @_horn_kernel(%arg0: i32, %arg1: memref<2x128xf32, #tpu.memory_space<vmem>>, %arg2: memref<2x128xf32, #tpu.memory_space<vmem>>, %arg3: memref<2x1xf32, #tpu.memory_space<vmem>>) attributes {dimension_semantics = [#tpu.dimension_semantics<parallel>], iteration_bounds = array<i64: 1>, scalar_prefetch = 0 : i64, scratch_operands = 0 : i64, tpu.core_type = #tpu.core_type<tc>, window_params = [{transform_indices = @transform_0, window_bounds = array<i64: 2, 128>}, {pipeline_mode = #tpu.pipeline_mode<synchronous>, transform_indices = @transform_1, window_bounds = array<i64: 2, 128>}, {transform_indices = @transform_2, window_bounds = array<i64: 2, 1>}]} {
    %c0 = arith.constant 0 : index
    %c0_0 = arith.constant 0 : index
    %0 = vector.load %arg2[%c0, %c0_0] : memref<2x128xf32, #tpu.memory_space<vmem>>, vector<1x128xf32>
    %c1 = arith.constant 1 : index
    %c0_1 = arith.constant 0 : index
    %1 = vector.load %arg2[%c1, %c0_1] : memref<2x128xf32, #tpu.memory_space<vmem>>, vector<1x128xf32>
    %c0_2 = arith.constant 0 : index
    %c0_3 = arith.constant 0 : index
    %2 = vector.load %arg1[%c0_2, %c0_3] : memref<2x128xf32, #tpu.memory_space<vmem>>, vector<2x128xf32>
    %3 = vector.broadcast %0 : vector<1x128xf32> to vector<2x128xf32>
    %4 = arith.mulf %2, %3 : vector<2x128xf32>
    %5 = vector.broadcast %1 : vector<1x128xf32> to vector<2x128xf32>
    %6 = arith.addf %5, %4 : vector<2x128xf32>
    %7 = vector.extract_strided_slice %6 {offsets = [0, 0], sizes = [2, 64], strides = [1, 1]} : vector<2x128xf32> to vector<2x64xf32>
    %8 = vector.extract_strided_slice %6 {offsets = [0, 64], sizes = [2, 64], strides = [1, 1]} : vector<2x128xf32> to vector<2x64xf32>
    %9 = arith.mulf %7, %8 : vector<2x64xf32>
    %10 = vector.extract_strided_slice %9 {offsets = [0, 0], sizes = [2, 32], strides = [1, 1]} : vector<2x64xf32> to vector<2x32xf32>
    %11 = vector.extract_strided_slice %9 {offsets = [0, 32], sizes = [2, 32], strides = [1, 1]} : vector<2x64xf32> to vector<2x32xf32>
    %12 = arith.mulf %10, %11 : vector<2x32xf32>
    %13 = vector.extract_strided_slice %12 {offsets = [0, 0], sizes = [2, 16], strides = [1, 1]} : vector<2x32xf32> to vector<2x16xf32>
    %14 = vector.extract_strided_slice %12 {offsets = [0, 16], sizes = [2, 16], strides = [1, 1]} : vector<2x32xf32> to vector<2x16xf32>
    %15 = arith.mulf %13, %14 : vector<2x16xf32>
    %16 = vector.extract_strided_slice %15 {offsets = [0, 0], sizes = [2, 8], strides = [1, 1]} : vector<2x16xf32> to vector<2x8xf32>
    %17 = vector.extract_strided_slice %15 {offsets = [0, 8], sizes = [2, 8], strides = [1, 1]} : vector<2x16xf32> to vector<2x8xf32>
    %18 = arith.mulf %16, %17 : vector<2x8xf32>
    %19 = vector.extract_strided_slice %18 {offsets = [0, 0], sizes = [2, 4], strides = [1, 1]} : vector<2x8xf32> to vector<2x4xf32>
    %20 = vector.extract_strided_slice %18 {offsets = [0, 4], sizes = [2, 4], strides = [1, 1]} : vector<2x8xf32> to vector<2x4xf32>
    %21 = arith.mulf %19, %20 : vector<2x4xf32>
    %22 = vector.extract_strided_slice %21 {offsets = [0, 0], sizes = [2, 2], strides = [1, 1]} : vector<2x4xf32> to vector<2x2xf32>
    %23 = vector.extract_strided_slice %21 {offsets = [0, 2], sizes = [2, 2], strides = [1, 1]} : vector<2x4xf32> to vector<2x2xf32>
    %24 = arith.mulf %22, %23 : vector<2x2xf32>
    %25 = vector.extract_strided_slice %24 {offsets = [0, 0], sizes = [2, 1], strides = [1, 1]} : vector<2x2xf32> to vector<2x1xf32>
    %26 = vector.extract_strided_slice %24 {offsets = [0, 1], sizes = [2, 1], strides = [1, 1]} : vector<2x2xf32> to vector<2x1xf32>
    %27 = arith.mulf %25, %26 : vector<2x1xf32>
    %c0_4 = arith.constant 0 : index
    %c0_5 = arith.constant 0 : index
    %28 = vector.load %arg3[%c0_4, %c0_5] : memref<2x1xf32, #tpu.memory_space<vmem>>, vector<2x1xf32>
    tpu.vector_store %arg3[%c0_4, %c0_5], %27 {strides = array<i32>} : memref<2x1xf32, #tpu.memory_space<vmem>>, vector<2x1xf32>,
    return
  }
  func.func @transform_0(%arg0: i32) -> (i32, i32) {
    %c0_i32 = arith.constant 0 : i32
    %c0_i32_0 = arith.constant 0 : i32
    return %arg0, %c0_i32 : i32, i32
  }
  func.func @transform_1(%arg0: i32) -> (i32, i32) {
    %c0_i32 = arith.constant 0 : i32
    %c0_i32_0 = arith.constant 0 : i32
    %c0_i32_1 = arith.constant 0 : i32
    return %c0_i32, %c0_i32_0 : i32, i32
  }
  func.func @transform_2(%arg0: i32) -> (i32, i32) {
    %c0_i32 = arith.constant 0 : i32
    %c0_i32_0 = arith.constant 0 : i32
    return %arg0, %c0_i32 : i32, i32
  }
}

</mosaic_0001>

<llo_original>
// kernel: tpu_custom_call.1
$region0: #{tpu_custom_call.1}
  #allocation0 [shape = 'u32[]', space=smem, size = 0x4, offset = 0x4, fixed_abs, tag = 'smem constant byte address 0x4 - core index']
  #allocation1 [shape = 'u32[144,128]{1,0:T(1,128)}', space=vmem, size = 0x12000, scoped, tag = 'internal scratch']
  %s0 = inlined_call_operand.hbm [shape: f32[2,128], index: 0, kind: input, shape index: {}]
  %s1 = inlined_call_operand.hbm [shape: f32[2,128], index: 1, kind: input, shape index: {}]
  %s2 = inlined_call_operand.vmem [shape: f32[2,1], index: 2, kind: output, shape index: {}]
  %s3 = sld [smem:[#allocation0]]
  $region26: #{tpu_custom_call.1} parent=0
    _
  %s5 = ssub.s32 1, %s3
  %s6 = scalar_select 0, %s5, %s3
  $region1: #{tpu_custom_call.1} parent=0
    #allocation2 [shape = 'u8[1024]{0}', space=vmem, size = 0x400, scoped, tag = 'input window, operand 0, single buffered']
    #allocation3 [shape = 's32[1]{0}', space=sflag, size = 0x4, scoped, tag = 'scoped memory for tpu_custom_call.1']
    #allocation4 [shape = 'u8[1024]{0}', space=vmem, size = 0x400, scoped, tag = 'input window, operand 1, single buffered']
    #allocation5 [shape = 's32[1]{0}', space=sflag, size = 0x4, scoped, tag = 'scoped memory for tpu_custom_call.1']
    %7 = vsyncpa [#allocation3], 0
    %8 = vsyncpa [#allocation5], 0
    // Predicated region
    $region2: #{tpu_custom_call.1} parent=1 // pred_check
      _
    $region3: #{tpu_custom_call.1} parent=1 // pred_check_branch
      %10 = sbr.rel (0) target = $region5
    $region4: #{tpu_custom_call.1} parent=1 // pred_region
      %s12 = ssub.s32 32, 32
      %13 = vsyncadd [#allocation3], %s12
      %s15 = sshll.u32 [#allocation2], 4
      %s16 = int_to_ptr.vmem [resolvable:$true] %s15
      %18 = dma.hbm_to_vmem [thread:$0]  %s0, 32, %s16, [#allocation3]
    $region5: #{tpu_custom_call.1} parent=1 // pred_fallthru
      _
    // Predicated region
    $region6: #{tpu_custom_call.1} parent=1 // pred_check
      _
    $region7: #{tpu_custom_call.1} parent=1 // pred_check_branch
      %20 = sbr.rel (0) target = $region9
    $region8: #{tpu_custom_call.1} parent=1 // pred_region
      %s22 = ssub.s32 32, 32
      %23 = vsyncadd [#allocation5], %s22
      %s25 = sshll.u32 [#allocation4], 4
      %s26 = int_to_ptr.vmem [resolvable:$true] %s25
      %28 = dma.hbm_to_vmem [thread:$0]  %s1, 32, %s26, [#allocation5]
    $region9: #{tpu_custom_call.1} parent=1 // pred_fallthru
      _
    // Predicated region
    $region10: #{tpu_custom_call.1} parent=1 // pred_check
      _
    $region11: #{tpu_custom_call.1} parent=1 // pred_check_branch
      %30 = sbr.rel (0) target = $region13
    $region12: #{tpu_custom_call.1} parent=1 // pred_region
      %31 = dma.done [#allocation3], 32
    $region13: #{tpu_custom_call.1} parent=1 // pred_fallthru
      _
    // Predicated region
    $region14: #{tpu_custom_call.1} parent=1 // pred_check
      _
    $region15: #{tpu_custom_call.1} parent=1 // pred_check_branch
      %33 = sbr.rel (0) target = $region17
    $region16: #{tpu_custom_call.1} parent=1 // pred_region
      %34 = dma.done [#allocation5], 32
    $region17: #{tpu_custom_call.1} parent=1 // pred_fallthru
      _
    %v35 = vld [vmem:[#allocation4] sm:$0x1]
    %v36 = vld [vmem:[#allocation4 + $0x1] sm:$0x1]
    %v37 = vld [vmem:[#allocation2] sm:$0x3]
    %v38 = vlaneseq
    %v39 = vshrl.u32 %v38, 7
    %v40 = vsub.s32 0, %v39
    %v41 = vrot.slane %v35, %v40
    %v42 = vmul.f32 %v37, %v41
    %v43 = vlaneseq
    %v44 = vshrl.u32 %v43, 7
    %v45 = vsub.s32 0, %v44
    %v46 = vrot.slane %v36, %v45
    %v47 = vadd.f32 %v46, %v42
    %49 = vrot.lane.b32.xlu0 %v47, 64
    %v50 = vpop.permute.xlu0 %49
    %v52 = vmul.f32 %v47, %v50
    %54 = vrot.lane.b32.xlu0 %v52, 96
    %v55 = vpop.permute.xlu0 %54
    %v57 = vmul.f32 %v52, %v55
    %59 = vrot.lane.b32.xlu0 %v57, 112
    %v60 = vpop.permute.xlu0 %59
    %v62 = vmul.f32 %v57, %v60
    %64 = vrot.lane.b32.xlu0 %v62, 120
    %v65 = vpop.permute.xlu0 %64
    %v67 = vmul.f32 %v62, %v65
    %69 = vrot.lane.b32.xlu0 %v67, 124
    %v70 = vpop.permute.xlu0 %69
    %v72 = vmul.f32 %v67, %v70
    %74 = vrot.lane.b32.xlu0 %v72, 126
    %v75 = vpop.permute.xlu0 %74
    %v77 = vmul.f32 %v72, %v75
    %79 = vrot.lane.b32.xlu0 %v77, 127
    %v80 = vpop.permute.xlu0 %79
    %v82 = vmul.f32 %v77, %v80
    %vm83 = vcmask 1024
    %84 = vst.msk [vmem:[%s2] sm:$0x3] %vm83, %v82
    // Predicated region
    $region18: #{tpu_custom_call.1} parent=1 // pred_check
      _
    $region19: #{tpu_custom_call.1} parent=1 // pred_check_branch
      %86 = sbr.rel (0) target = $region21
    $region20: #{tpu_custom_call.1} parent=1 // pred_region
      _
    $region21: #{tpu_custom_call.1} parent=1 // pred_fallthru
      _
    // Predicated region
    $region22: #{tpu_custom_call.1} parent=1 // pred_check
      _
    $region23: #{tpu_custom_call.1} parent=1 // pred_check_branch
      %88 = sbr.rel (0) target = $region25
    $region24: #{tpu_custom_call.1} parent=1 // pred_region
      _
    $region25: #{tpu_custom_call.1} parent=1 // pred_fallthru
      _
    %89 = vsyncpa [#allocation3], 1
    %90 = vsyncpa [#allocation5], 1

</llo_original>
